<compile_context>
chip_gen: v5e
topology: v5e:2x2
jax: 0.10.0
libtpu: 0.0.40
codegen_flags: <defaults>
</compile_context>

<pallas_src>
import jax
import jax.numpy as jnp
from jax import lax
from jax.experimental import pallas as pl
from jax.experimental.pallas import tpu as pltpu


def _round_up(x, m):
    return (x + m - 1) // m * m


def _cdiv(a, b):
    return (a + b - 1) // b


def _vmem_capacity_bytes():
    """Generation-aware VMEM capacity (64 MiB on v7x, 128 MiB on v5e/v6e)."""
    try:
        cap = getattr(pltpu.get_tpu_info(), "vmem_capacity_bytes", None)
        if cap:
            return int(cap)
    except Exception:
        pass
    return 64 * 1024 * 1024  # v7x-safe fallback


def _budgets():
    cap = _vmem_capacity_bytes()
    vmem_limit = int(min(cap * 3 // 4, 112 * 1024 * 1024))
    tile_budget = vmem_limit // 2          # double-buffered working-set budget
    return vmem_limit, tile_budget


# ----------------------------------------------------------------------------
# Kernel 1: positive edge scores  score[e] = sum_d head[e,d]*rel[e,d]*tail[e,d]
#   - (te, D) input tiles on the VPU (D is a full-dim block: no HBM padding),
#   - lane reduction on the XLU,
#   - lane-dense (1, te) output row per grid step (unmasked stores).
# ----------------------------------------------------------------------------
def _edge_score_kernel(h_ref, r_ref, t_ref, o_ref):
    h = h_ref[...].astype(jnp.float32)      # per-operand cast (bf16-input safe)
    r = r_ref[...].astype(jnp.float32)
    t = t_ref[...].astype(jnp.float32)
    s = jnp.sum(h * r * t, axis=-1)         # (te,)  XLU lane reduce
    o_ref[...] = s[None, :]                 # (1, te) lane-dense store


def distmult_edge_score(head, rel, tail, *, tile_rows=None):
    """head, rel, tail: (E, D)  ->  (E,) float32."""
    E, D = head.shape
    vmem_limit, tile_budget = _budgets()

    if tile_rows is None:
        # 3 input streams x 2 pipeline buffers x D x 4B per row (+ output lane).
        bytes_per_row = 3 * 2 * D * 4 + 2 * 4
        te = max(128, (tile_budget // bytes_per_row) // 128 * 128)
        te = min(te, 8192)
        # keep >= 2 grid steps on large E so both v7x TensorCores get work.
        te = min(te, max(128, _round_up(_cdiv(E, 2), 128)))
    else:
        te = max(1, int(tile_rows))

    # Lane-dense / (8,128)-safe tile sizing without padding the inputs:
    #   te == E  -> single full-dim block (always legal), or
    #   te < E   -> te is a multiple of 128 (sublane-/lane-aligned blocks).
    if te >= E:
        te = E
    else:
        te = _round_up(te, 128)
        if te >= E:
            te = E
    n_tiles = _cdiv(E, te)

    out = pl.pallas_call(
        _edge_score_kernel,
        out_shape=jax.ShapeDtypeStruct((1, n_tiles * te), jnp.float32),
        grid=(n_tiles,),
        in_specs=[
            pl.BlockSpec((te, D), lambda i: (i, 0)),
            pl.BlockSpec((te, D), lambda i: (i, 0)),
            pl.BlockSpec((te, D), lambda i: (i, 0)),
        ],
        out_specs=pl.BlockSpec((1, te), lambda i: (0, i)),
        compiler_params=pltpu.CompilerParams(
            dimension_semantics=("parallel",),
            vmem_limit_bytes=vmem_limit,
        ),
        cost_estimate=pl.CostEstimate(
            flops=3 * E * D,
            transcendentals=0,
            bytes_accessed=(3 * E * D + E) * 4,
        ),
    )(head, rel, tail)
    # rows >= E in the last (partial) input block produce garbage scores that
    # land in output lanes >= E; they are sliced away here.
    return out[0, :E]


# ----------------------------------------------------------------------------
# Kernel 2: negative-sampling scores.
#   Per grid step (c, n):  tmp = pos * rel        (cb, cs, D)  f32 VPU
#                          out = tmp @ neg^T      (cb, cs, tn) MXU, f32 acc
#   dot_general contracts the last dims directly; operands are cast to
#   matmul_dtype (bf16 by default) only right before the dot.
# ----------------------------------------------------------------------------
def _make_neg_kernel(matmul_dtype):
    def kernel(pos_ref, rel_ref, neg_ref, o_ref):
        # Elementwise multiply in f32 (v5e VPU has no bf16 ALUs).
        tmp = pos_ref[...].astype(jnp.float32) * rel_ref[...].astype(jnp.float32)
        if matmul_dtype is not None:
            lhs = tmp.astype(matmul_dtype)
            rhs = neg_ref[...].astype(matmul_dtype)
        else:
            lhs = tmp
            rhs = neg_ref[...].astype(jnp.float32)
        o_ref[...] = lax.dot_general(
            lhs, rhs,
            dimension_numbers=(((2,), (2,)), ((0,), (0,))),
            preferred_element_type=jnp.float32)
    return kernel


def _neg_tiles(num_chunks, cs, ns, D, budget):
    """Pick (chunk-batch cb, negative tile tn) within the VMEM tile budget."""
    def step_bytes(cb, tn):
        in_b = 2 * 4 * cb * (2 * cs * D + tn * D)   # double-buffered f32 inputs
        out_b = 2 * 4 * cb * cs * tn                # double-buffered f32 output
        return in_b + out_b

    tn = ns
    if step_bytes(1, tn) > budget and ns > 128:
        # Tile the negative-sample axis (multiples of 128 -> lane-aligned).
        tn = 128
        while 2 * tn < ns and step_bytes(1, 2 * tn) <= budget:
            tn *= 2

    # Keep the chunk axis >= 2 grid steps so both v7x TensorCores get work.
    cb_cap = _cdiv(num_chunks, 2) if num_chunks > 1 else 1
    fit = budget // max(1, step_bytes(1, tn))
    cb = max(1, min(cb_cap, fit))
    return cb, tn


def _distmult_neg_score(pos, rel, neg, num_chunks, chunk_size, neg_sample_size,
                        *, matmul_dtype=jnp.bfloat16):
    """pos, rel: (num_chunks*chunk_size, D); neg: (num_chunks*neg_sample_size, D)."""
    D = pos.shape[1]
    vmem_limit, tile_budget = _budgets()

    pos3 = pos.reshape(num_chunks, chunk_size, D)
    rel3 = rel.reshape(num_chunks, chunk_size, D)
    neg3 = neg.reshape(num_chunks, neg_sample_size, D)

    cb, tn = _neg_tiles(num_chunks, chunk_size, neg_sample_size, D, tile_budget)
    grid = (_cdiv(num_chunks, cb), _cdiv(neg_sample_size, tn))

    flops = num_chunks * (chunk_size * D + 2 * chunk_size * neg_sample_size * D)
    bytes_accessed = 4 * num_chunks * (2 * chunk_size * D + neg_sample_size * D
                                       + chunk_size * neg_sample_size)

    out = pl.pallas_call(
        _make_neg_kernel(matmul_dtype),
        out_shape=jax.ShapeDtypeStruct(
            (num_chunks, chunk_size, neg_sample_size), jnp.float32),
        grid=grid,
        in_specs=[
            # chunk_size / neg_sample_size / D are full-dim blocks -> no padding.
            pl.BlockSpec((cb, chunk_size, D), lambda c, n: (c, 0, 0)),
            pl.BlockSpec((cb, chunk_size, D), lambda c, n: (c, 0, 0)),
            pl.BlockSpec((cb, tn, D), lambda c, n: (c, n, 0)),
        ],
        out_specs=pl.BlockSpec((cb, chunk_size, tn), lambda c, n: (c, 0, n)),
        compiler_params=pltpu.CompilerParams(
            dimension_semantics=("parallel", "parallel"),
            vmem_limit_bytes=vmem_limit,
        ),
        cost_estimate=pl.CostEstimate(
            flops=flops, transcendentals=0, bytes_accessed=bytes_accessed),
    )(pos3, rel3, neg3)
    return out


def distmult_create_neg(neg_head, *, matmul_dtype=jnp.bfloat16):
    """Mirrors DistMultScore.create_neg: returns fn(heads, relations, tails, ...)."""
    if neg_head:
        def fn(heads, relations, tails, num_chunks, chunk_size, neg_sample_size):
            # tmp = tails * relations ; score = bmm(tmp, heads^T per chunk)
            return _distmult_neg_score(tails, relations, heads,
                                       num_chunks, chunk_size, neg_sample_size,
                                       matmul_dtype=matmul_dtype)
        return fn
    else:
        def fn(heads, relations, tails, num_chunks, chunk_size, neg_sample_size):
            # tmp = heads * relations ; score = bmm(tmp, tails^T per chunk)
            return _distmult_neg_score(heads, relations, tails,
                                       num_chunks, chunk_size, neg_sample_size,
                                       matmul_dtype=matmul_dtype)
        return fn


# ----------------------------------------------------------------------------
# Pure-JAX references for correctness checking
# ----------------------------------------------------------------------------
def _ref_edge_score(h, r, t):
    return jnp.sum(h * r * t, axis=-1)


def _ref_neg_score(pos, rel, neg, num_chunks, chunk_size, neg_sample_size,
                   operand_dtype=None):
    D = pos.shape[1]
    tmp = (pos * rel).reshape(num_chunks, chunk_size, D)
    negs = neg.reshape(num_chunks, neg_sample_size, D).transpose(0, 2, 1)
    if operand_dtype is not None:    # precision-matched ref for the bf16 MXU path
        tmp = tmp.astype(operand_dtype).astype(jnp.float32)
        negs = negs.astype(operand_dtype).astype(jnp.float32)
    return jnp.matmul(tmp, negs)


# TODO(synk): DGL graph plumbing (g.apply_edges gather of src/dst/edge embeddings)
# stays outside the kernel; the kernels implement the edge_func / create_neg math.

if __name__ == "__main__":
    key = jax.random.PRNGKey(0)
    D = 32               # hidden_dim (not a multiple of 128 -> exercises full-dim blocks)
    E = 8                # number of positive edges
    num_chunks = 2
    chunk_size = 8
    neg_sample_size = 16

    k1, k2, k3, k4, k5, k6 = jax.random.split(key, 6)

    # Positive (per-edge) embeddings.
    head = jax.random.normal(k1, (E, D), dtype=jnp.float32)
    rel = jax.random.normal(k2, (E, D), dtype=jnp.float32)
    tail = jax.random.normal(k3, (E, D), dtype=jnp.float32)

    # Negative-sampling batches.
    heads_n = jax.random.normal(k4, (num_chunks * neg_sample_size, D), jnp.float32)
    rels_n = jax.random.normal(k5, (num_chunks * chunk_size, D), jnp.float32)
    tails_n = jax.random.normal(k6, (num_chunks * chunk_size, D), jnp.float32)

    # 1) edge_func path
    score = distmult_edge_score(head, rel, tail)
    jax.block_until_ready(score)
    assert score.shape == (E,)
    assert jnp.allclose(score, _ref_edge_score(head, rel, tail),
                        rtol=1e-5, atol=1e-4)

    # 2) create_neg(neg_head=True), f32 MXU path (exact vs f32 reference)
    fn_h32 = distmult_create_neg(True, matmul_dtype=None)
    s_h32 = fn_h32(heads_n, rels_n, tails_n,
                   num_chunks, chunk_size, neg_sample_size)
    jax.block_until_ready(s_h32)
    assert s_h32.shape == (num_chunks, chunk_size, neg_sample_size)
    assert jnp.allclose(
        s_h32,
        _ref_neg_score(tails_n, rels_n, heads_n,
                       num_chunks, chunk_size, neg_sample_size),
        rtol=1e-5, atol=1e-4)

    # 3) create_neg(neg_head=True), default bf16-operand MXU path
    #    (checked against a precision-matched reference).
    fn_h = distmult_create_neg(True)
    s_h = fn_h(heads_n, rels_n, tails_n,
               num_chunks, chunk_size, neg_sample_size)
    jax.block_until_ready(s_h)
    assert s_h.shape == (num_chunks, chunk_size, neg_sample_size)
    assert jnp.allclose(
        s_h,
        _ref_neg_score(tails_n, rels_n, heads_n,
                       num_chunks, chunk_size, neg_sample_size,
                       operand_dtype=jnp.bfloat16),
        rtol=1e-3, atol=1e-3)

    # 4) create_neg(neg_head=False), f32 MXU path
    heads_p = jax.random.normal(k4, (num_chunks * chunk_size, D), jnp.float32)
    tails_neg = jax.random.normal(k6, (num_chunks * neg_sample_size, D), jnp.float32)
    fn_t32 = distmult_create_neg(False, matmul_dtype=None)
    s_t32 = fn_t32(heads_p, rels_n, tails_neg,
                   num_chunks, chunk_size, neg_sample_size)
    jax.block_until_ready(s_t32)
    assert s_t32.shape == (num_chunks, chunk_size, neg_sample_size)
    assert jnp.allclose(
        s_t32,
        _ref_neg_score(heads_p, rels_n, tails_neg,
                       num_chunks, chunk_size, neg_sample_size),
        rtol=1e-5, atol=1e-4)

    print("KERNEL_OK")
</pallas_src>

<mosaic_0001>
module attributes {stable_mosaic.version = 11 : i64} {
  func.func @_edge_score_kernel(%arg0: i32, %arg1: memref<8x32xf32, #tpu.memory_space<vmem>>, %arg2: memref<8x32xf32, #tpu.memory_space<vmem>>, %arg3: memref<8x32xf32, #tpu.memory_space<vmem>>, %arg4: memref<1x8xf32, #tpu.memory_space<vmem>>) attributes {dimension_semantics = [#tpu.dimension_semantics<parallel>], iteration_bounds = array<i64: 1>, scalar_prefetch = 0 : i64, scratch_operands = 0 : i64, tpu.core_type = #tpu.core_type<tc>, window_params = [{transform_indices = @transform_0, window_bounds = array<i64: 8, 32>}, {transform_indices = @transform_1, window_bounds = array<i64: 8, 32>}, {transform_indices = @transform_2, window_bounds = array<i64: 8, 32>}, {transform_indices = @transform_3, window_bounds = array<i64: 1, 8>}]} {
    %c0 = arith.constant 0 : index
    %c0_0 = arith.constant 0 : index
    %0 = vector.load %arg1[%c0, %c0_0] : memref<8x32xf32, #tpu.memory_space<vmem>>, vector<8x32xf32>
    %c0_1 = arith.constant 0 : index
    %c0_2 = arith.constant 0 : index
    %1 = vector.load %arg2[%c0_1, %c0_2] : memref<8x32xf32, #tpu.memory_space<vmem>>, vector<8x32xf32>
    %c0_3 = arith.constant 0 : index
    %c0_4 = arith.constant 0 : index
    %2 = vector.load %arg3[%c0_3, %c0_4] : memref<8x32xf32, #tpu.memory_space<vmem>>, vector<8x32xf32>
    %3 = arith.mulf %0, %1 : vector<8x32xf32>
    %4 = arith.mulf %3, %2 : vector<8x32xf32>
    %cst = arith.constant dense<0.000000e+00> : vector<8xf32>
    %5 = vector.multi_reduction <add>, %4, %cst [1] : vector<8x32xf32> to vector<8xf32>
    %6 = vector.shape_cast %5 : vector<8xf32> to vector<1x8xf32>
    %c0_5 = arith.constant 0 : index
    %c0_6 = arith.constant 0 : index
    %7 = vector.load %arg4[%c0_5, %c0_6] : memref<1x8xf32, #tpu.memory_space<vmem>>, vector<1x8xf32>
    tpu.vector_store %arg4[%c0_5, %c0_6], %6 {strides = array<i32>} : memref<1x8xf32, #tpu.memory_space<vmem>>, vector<1x8xf32>,
    return
  }
  func.func @transform_0(%arg0: i32) -> (i32, i32) {
    %c0_i32 = arith.constant 0 : i32
    %c0_i32_0 = arith.constant 0 : i32
    return %arg0, %c0_i32 : i32, i32
  }
  func.func @transform_1(%arg0: i32) -> (i32, i32) {
    %c0_i32 = arith.constant 0 : i32
    %c0_i32_0 = arith.constant 0 : i32
    return %arg0, %c0_i32 : i32, i32
  }
  func.func @transform_2(%arg0: i32) -> (i32, i32) {
    %c0_i32 = arith.constant 0 : i32
    %c0_i32_0 = arith.constant 0 : i32
    return %arg0, %c0_i32 : i32, i32
  }
  func.func @transform_3(%arg0: i32) -> (i32, i32) {
    %c0_i32 = arith.constant 0 : i32
    %c0_i32_0 = arith.constant 0 : i32
    return %c0_i32, %arg0 : i32, i32
  }
}

</mosaic_0001>

<llo_original>
// kernel: tpu_custom_call.1
$region0: #{tpu_custom_call.1}
  #allocation0 [shape = 'u32[]', space=smem, size = 0x4, offset = 0x4, fixed_abs, tag = 'smem constant byte address 0x4 - core index']
  #allocation1 [shape = 'u32[72,128]{1,0:T(1,128)}', space=vmem, size = 0x9000, scoped, tag = 'internal scratch']
  %s0 = inlined_call_operand.hbm [shape: f32[8,32], index: 0, kind: input, shape index: {}]
  %s1 = inlined_call_operand.hbm [shape: f32[8,32], index: 1, kind: input, shape index: {}]
  %s2 = inlined_call_operand.hbm [shape: f32[8,32], index: 2, kind: input, shape index: {}]
  %s3 = inlined_call_operand.hbm [shape: f32[1,8], index: 3, kind: output, shape index: {}]
  %s4 = sld [smem:[#allocation0]]
  $region34: #{tpu_custom_call.1} parent=0
    _
  %s6 = ssub.s32 1, %s4
  %s7 = scalar_select 0, %s6, %s4
  $region1: #{tpu_custom_call.1} parent=0
    #allocation2 [shape = 'u8[4096]{0}', space=vmem, size = 0x1000, scoped, tag = 'input window, operand 0, single buffered']
    #allocation3 [shape = 's32[1]{0}', space=sflag, size = 0x4, scoped, tag = 'scoped memory for tpu_custom_call.1']
    #allocation4 [shape = 's32[1]{0}', space=sflag, size = 0x4, scoped, tag = 'scoped memory for tpu_custom_call.1']
    #allocation5 [shape = 'u8[4096]{0}', space=vmem, size = 0x1000, scoped, tag = 'input window, operand 1, single buffered']
    #allocation6 [shape = 's32[1]{0}', space=sflag, size = 0x4, scoped, tag = 'scoped memory for tpu_custom_call.1']
    #allocation7 [shape = 'u8[4096]{0}', space=vmem, size = 0x1000, scoped, tag = 'input window, operand 2, single buffered']
    #allocation8 [shape = 'u8[512]{0}', space=vmem, size = 0x400, scoped, tag = 'output window, operand 0, single buffered']
    %8 = vsyncpa [#allocation3], 0
    %9 = vsyncpa [#allocation6], 0
    %10 = vsyncpa [#allocation4], 0
    // Predicated region
    $region2: #{tpu_custom_call.1} parent=1 // pred_check
      _
    $region3: #{tpu_custom_call.1} parent=1 // pred_check_branch
      %12 = sbr.rel (0) target = $region5
    $region4: #{tpu_custom_call.1} parent=1 // pred_region
      %14 = vsyncadd [#allocation3], 0
      %s16 = sshll.u32 %s0, 4
      %s17 = int_to_ptr.hbm [resolvable:$true] %s16
      %s18 = sshll.u32 [#allocation2], 4
      %s19 = int_to_ptr.vmem [resolvable:$true] %s18
      %21 = dma.hbm_to_vmem [thread:$0]  %s17, 128, %s19, [#allocation3]
    $region5: #{tpu_custom_call.1} parent=1 // pred_fallthru
      _
    // Predicated region
    $region6: #{tpu_custom_call.1} parent=1 // pred_check
      _
    $region7: #{tpu_custom_call.1} parent=1 // pred_check_branch
      %23 = sbr.rel (0) target = $region9
    $region8: #{tpu_custom_call.1} parent=1 // pred_region
      %25 = vsyncadd [#allocation6], 0
      %s27 = sshll.u32 %s1, 4
      %s28 = int_to_ptr.hbm [resolvable:$true] %s27
      %s29 = sshll.u32 [#allocation5], 4
      %s30 = int_to_ptr.vmem [resolvable:$true] %s29
      %32 = dma.hbm_to_vmem [thread:$0]  %s28, 128, %s30, [#allocation6]
    $region9: #{tpu_custom_call.1} parent=1 // pred_fallthru
      _
    // Predicated region
    $region10: #{tpu_custom_call.1} parent=1 // pred_check
      _
    $region11: #{tpu_custom_call.1} parent=1 // pred_check_branch
      %34 = sbr.rel (0) target = $region13
    $region12: #{tpu_custom_call.1} parent=1 // pred_region
      %36 = vsyncadd [#allocation6], 0
      %s38 = sshll.u32 %s2, 4
      %s39 = int_to_ptr.hbm [resolvable:$true] %s38
      %s40 = sshll.u32 [#allocation7], 4
      %s41 = int_to_ptr.vmem [resolvable:$true] %s40
      %43 = dma.hbm_to_vmem [thread:$0]  %s39, 128, %s41, [#allocation6]
    $region13: #{tpu_custom_call.1} parent=1 // pred_fallthru
      _
    // Predicated region
    $region14: #{tpu_custom_call.1} parent=1 // pred_check
      _
    $region15: #{tpu_custom_call.1} parent=1 // pred_check_branch
      %45 = sbr.rel (0) target = $region17
    $region16: #{tpu_custom_call.1} parent=1 // pred_region
      %47 = dma.done [#allocation3], 128
    $region17: #{tpu_custom_call.1} parent=1 // pred_fallthru
      _
    // Predicated region
    $region18: #{tpu_custom_call.1} parent=1 // pred_check
      _
    $region19: #{tpu_custom_call.1} parent=1 // pred_check_branch
      %49 = sbr.rel (0) target = $region21
    $region20: #{tpu_custom_call.1} parent=1 // pred_region
      %51 = dma.done [#allocation6], 128
    $region21: #{tpu_custom_call.1} parent=1 // pred_fallthru
      _
    // Predicated region
    $region22: #{tpu_custom_call.1} parent=1 // pred_check
      _
    $region23: #{tpu_custom_call.1} parent=1 // pred_check_branch
      %53 = sbr.rel (0) target = $region25
    $region24: #{tpu_custom_call.1} parent=1 // pred_region
      %55 = dma.done [#allocation6], 128
    $region25: #{tpu_custom_call.1} parent=1 // pred_fallthru
      _
    %v56 = vld [vmem:[#allocation2] sm:$0xff]
    %v57 = vld [vmem:[#allocation5] sm:$0xff]
    %v58 = vld [vmem:[#allocation7] sm:$0xff]
    %v59 = vmul.f32 %v56, %v57
    %v60 = vmul.f32 %v59, %v58
    %vm61 = vcmask 261120
    %v62 = vsel %vm61, %v60, 0.0
    %63 = vadd.xlane.f32.xlu0 %v62
    %v64 = vpop.xlane.xlu0 %63
    %v66 = vlaneseq
    %v67 = vand.u32 %v66, 127
    %v68 = vperm.slane %v64, %v67
    %vm70 = vcmask 57344
    %71 = vst.msk [vmem:[#allocation8] sm:$0x1] %vm70, %v68
    // Predicated region
    $region26: #{tpu_custom_call.1} parent=1 // pred_check
      _
    $region27: #{tpu_custom_call.1} parent=1 // pred_check_branch
      %73 = sbr.rel (0) target = $region29
    $region28: #{tpu_custom_call.1} parent=1 // pred_region
      %75 = vsyncadd [#allocation4], 0
      %s77 = sshll.u32 [#allocation8], 4
      %s78 = int_to_ptr.vmem [resolvable:$true] %s77
      %s79 = sshll.u32 %s3, 4
      %s80 = int_to_ptr.hbm [resolvable:$true] %s79
      %82 = dma.vmem_to_hbm [thread:$0]  %s78, 16, %s80, [#allocation4]
    $region29: #{tpu_custom_call.1} parent=1 // pred_fallthru
      _
    // Predicated region
    $region30: #{tpu_custom_call.1} parent=1 // pred_check
      _
    $region31: #{tpu_custom_call.1} parent=1 // pred_check_branch
      %84 = sbr.rel (0) target = $region33
    $region32: #{tpu_custom_call.1} parent=1 // pred_region
      %86 = dma.done [#allocation4], 16
    $region33: #{tpu_custom_call.1} parent=1 // pred_fallthru
      _
    %87 = vsyncpa [#allocation3], 1
    %88 = vsyncpa [#allocation6], 1
    %89 = vsyncpa [#allocation4], 1

</llo_original>
